<compile_context>
chip_gen: v6e
topology: v6e:2x2x1
jax: 0.10.0
libtpu: 0.0.40
codegen_flags: <defaults>
</compile_context>

<pallas_src>
import functools

import jax
import jax.numpy as jnp
from jax import lax
from jax.experimental import pallas as pl
from jax.experimental.pallas import tpu as pltpu

LN_EPS = 1e-5   # torch.nn.LayerNorm default
LANE = 128
SUBLANE = 8


def _round_up(x, m):
  return (x + m - 1) // m * m


def _chip_config():
  """Per-generation tile / VMEM defaults."""
  try:
    kind = jax.devices()[0].device_kind.lower()
  except Exception:
    kind = ""
  if "v7" in kind or "7x" in kind:
    # 64 MiB physical per TC -> leave headroom; 2 TensorCores per chip.
    return dict(tm=256, vmem_limit=52 * 1024 * 1024, num_tc=2)
  if "v6" in kind:
    return dict(tm=512, vmem_limit=100 * 1024 * 1024, num_tc=1)
  if "v5e" in kind or "v5 lite" in kind or "v5lite" in kind:
    # TODO(synk): if bundle dumps show vst-slot saturation from spilled f32
    # intermediates on v5e (single store slot), back tm off to 256.
    return dict(tm=512, vmem_limit=96 * 1024 * 1024, num_tc=1)
  # Unknown generation: conservative defaults.
  return dict(tm=256, vmem_limit=64 * 1024 * 1024, num_tc=1)


def _mlp_block_kernel(
    x_ref,        # (tm, in_p)     bf16
    w_in_ref,     # (in_p, hid_p)  bf16
    w1_ref,       # (hid_p, hid_p) bf16
    w2_ref,       # (hid_p, hid_p) bf16
    w_out_ref,    # (hid_p, out_p) bf16
    vecs_ref,     # (8, hid_p) f32 rows: [b_in, g1, be1, b1, g2, be2, b2, 0]
    b_out_ref,    # (1, out_p) f32
    a_ref,        # (1, 1) f32 in SMEM (shared nn.PReLU slope)
    o_ref,        # (tm, out_p)
    *,
    hidden_true,
):
  a = a_ref[0, 0]
  inv_h = jnp.float32(1.0 / hidden_true)

  def prelu(v):
    return jnp.where(v >= 0.0, v, a * v)

  def layernorm(v, gamma, beta):
    # One-pass moments.  Padded hidden lanes of `v` are exactly zero at every
    # stage (zero-padded weight columns, biases, gamma, beta), so summing over
    # the padded width and scaling by 1/hidden_true is exact; no lane mask or
    # second centered reduction is needed.
    mu = jnp.sum(v, axis=-1, keepdims=True) * inv_h
    ex2 = jnp.sum(v * v, axis=-1, keepdims=True) * inv_h
    var = jnp.maximum(ex2 - mu * mu, 0.0)     # guard tiny negative cancellation
    return (v - mu) * lax.rsqrt(var + LN_EPS) * gamma + beta

  # Static row slices of the packed bias/LN block (zero-cost views).
  b_in = vecs_ref[0:1, :]
  g1 = vecs_ref[1:2, :]
  be1 = vecs_ref[2:3, :]
  b1 = vecs_ref[3:4, :]
  g2 = vecs_ref[4:5, :]
  be2 = vecs_ref[5:6, :]
  b2 = vecs_ref[6:7, :]

  x = x_ref[...]                                      # (tm, in_p) bf16

  # in_proj  (bf16 MXU, f32 accumulate)
  h = jnp.dot(x, w_in_ref[...], preferred_element_type=jnp.float32) + b_in

  # main_path: LN -> PReLU -> Linear -> LN -> PReLU -> Linear
  y = prelu(layernorm(h, g1, be1))
  y = jnp.dot(y.astype(jnp.bfloat16), w1_ref[...],
              preferred_element_type=jnp.float32) + b1
  y = prelu(layernorm(y, g2, be2))
  y = jnp.dot(y.astype(jnp.bfloat16), w2_ref[...],
              preferred_element_type=jnp.float32) + b2

  # Residual (hidden -> hidden, shapes always match in this module)
  y = y + h

  # out_proj + final activation
  y = jnp.dot(y.astype(jnp.bfloat16), w_out_ref[...],
              preferred_element_type=jnp.float32) + b_out_ref[...]
  o_ref[...] = prelu(y).astype(o_ref.dtype)


def prepare_params(params):
  """One-time lane-dense pad + bf16 cast of the weights (hoisted out of the
  per-call path) plus packing of the 1-row bias / LN vectors."""
  in_dim, hidden = params["w_in"].shape
  out_dim = params["w_out"].shape[1]
  in_p = _round_up(in_dim, LANE)
  hid_p = _round_up(hidden, LANE)
  out_p = _round_up(out_dim, LANE)

  def pad2(a, r, c, dtype=jnp.float32):
    return jnp.pad(a, ((0, r - a.shape[0]), (0, c - a.shape[1]))).astype(dtype)

  # Rows: [b_in, ln1_g, ln1_b, b1, ln2_g, ln2_b, b2, <zeros>]
  vecs = jnp.zeros((8, hid_p), jnp.float32)
  rows = [params["b_in"], params["ln1_g"], params["ln1_b"], params["b1"],
          params["ln2_g"], params["ln2_b"], params["b2"]]
  for i, r in enumerate(rows):
    vecs = vecs.at[i, :hidden].set(r.reshape(-1).astype(jnp.float32))

  return dict(
      w_in=pad2(params["w_in"], in_p, hid_p, jnp.bfloat16),
      w1=pad2(params["w1"], hid_p, hid_p, jnp.bfloat16),
      w2=pad2(params["w2"], hid_p, hid_p, jnp.bfloat16),
      w_out=pad2(params["w_out"], hid_p, out_p, jnp.bfloat16),
      vecs=vecs,
      b_out=pad2(params["b_out"], 1, out_p, jnp.float32),
      prelu_a=params["prelu_a"].reshape(1, 1).astype(jnp.float32),
      in_dim=in_dim, hidden=hidden, out_dim=out_dim,
      in_p=in_p, hid_p=hid_p, out_p=out_p,
  )


def mlp_block_forward(x, prep, *, tm=None, out_dtype=jnp.float32):
  """x: (M, in_dim) float32.  prep: output of prepare_params()."""
  M, in_dim = x.shape
  assert in_dim == prep["in_dim"]
  in_p, hid_p, out_p = prep["in_p"], prep["hid_p"], prep["out_p"]
  hidden, out_dim = prep["hidden"], prep["out_dim"]

  cfg = _chip_config()
  if tm is None:
    tm = cfg["tm"]

  m8 = _round_up(max(M, 1), SUBLANE)
  tm_eff = min(_round_up(tm, SUBLANE), m8)

  # Megacore split: only when the chip has 2 TensorCores AND each half is at
  # least 128 rows (sub-128 tiles waste MXU M-passes / give sublane-padded
  # stores; on 1-TC chips the grid is a serial loop so splitting only adds
  # per-step overhead).
  if cfg["num_tc"] >= 2 and m8 // tm_eff < 2 and m8 >= 2 * LANE:
    tm_eff = _round_up(pl.cdiv(m8, 2), LANE)

  # Explicit VMEM budget: weights + packed vecs single-buffered (Buffered(1)),
  # double-buffered x/out blocks, ~3 live f32 (tm, hid_p) intermediates.
  out_bytes = jnp.dtype(out_dtype).itemsize
  def resident_bytes(t):
    w = 2 * (in_p * hid_p + 2 * hid_p * hid_p + hid_p * out_p)   # bf16 weights
    vec = 4 * (8 * hid_p + 8 * out_p)
    return (w + vec
            + 2 * t * in_p * 2             # x blocks (bf16, double-buffered)
            + 2 * t * out_p * out_bytes    # out blocks (double-buffered)
            + 3 * t * hid_p * 4)           # f32 intermediates (h, y, temp)
  while tm_eff > SUBLANE and resident_bytes(tm_eff) > int(0.85 * cfg["vmem_limit"]):
    tm_eff = max(SUBLANE, _round_up(tm_eff // 2, SUBLANE))
  # TODO(synk): on v7x with hidden >= ~3072 the square weights no longer fit
  # even single-buffered; stream w1/w2/w_out column tiles over a second
  # "arbitrary" grid axis with an f32 VMEM accumulator instead.

  m_pad = _round_up(max(M, 1), tm_eff)
  x_p = jnp.pad(x, ((0, m_pad - M), (0, in_p - in_dim))).astype(jnp.bfloat16)

  full = lambda i: (0, 0)
  def resident(shape):      # grid-invariant operand: keep one buffer only
    return pl.BlockSpec(shape, full, pipeline_mode=pl.Buffered(1))

  kernel = functools.partial(_mlp_block_kernel, hidden_true=hidden)

  grid_spec = pltpu.PrefetchScalarGridSpec(
      num_scalar_prefetch=0,
      grid=(m_pad // tm_eff,),
      in_specs=[
          pl.BlockSpec((tm_eff, in_p), lambda i: (i, 0)),      # x row tile
          resident((in_p, hid_p)),                             # w_in  (bf16)
          resident((hid_p, hid_p)),                            # w1    (bf16)
          resident((hid_p, hid_p)),                            # w2    (bf16)
          resident((hid_p, out_p)),                            # w_out (bf16)
          resident((8, hid_p)),                                # packed bias/LN
          resident((1, out_p)),                                # b_out
          pl.BlockSpec(memory_space=pltpu.MemorySpace.SMEM),   # PReLU scalar
      ],
      out_specs=pl.BlockSpec((tm_eff, out_p), lambda i: (i, 0)),
  )

  out = pl.pallas_call(
      kernel,
      out_shape=jax.ShapeDtypeStruct((m_pad, out_p), out_dtype),
      grid_spec=grid_spec,
      compiler_params=pltpu.CompilerParams(
          dimension_semantics=("parallel",),
          vmem_limit_bytes=cfg["vmem_limit"],
      ),
  )(
      x_p,
      prep["w_in"], prep["w1"], prep["w2"], prep["w_out"],
      prep["vecs"], prep["b_out"], prep["prelu_a"],
  )
  return out[:M, :out_dim]


def init_params(key, in_dim, hidden_dim, out_dim):
  ks = jax.random.split(key, 8)
  scale = 0.05
  return {
      # Linear weights stored already transposed: (in_features, out_features)
      "w_in":  scale * jax.random.normal(ks[0], (in_dim, hidden_dim), jnp.float32),
      "b_in":  scale * jax.random.normal(ks[1], (1, hidden_dim), jnp.float32),
      "w1":    scale * jax.random.normal(ks[2], (hidden_dim, hidden_dim), jnp.float32),
      "b1":    scale * jax.random.normal(ks[3], (1, hidden_dim), jnp.float32),
      "w2":    scale * jax.random.normal(ks[4], (hidden_dim, hidden_dim), jnp.float32),
      "b2":    scale * jax.random.normal(ks[5], (1, hidden_dim), jnp.float32),
      "w_out": scale * jax.random.normal(ks[6], (hidden_dim, out_dim), jnp.float32),
      "b_out": scale * jax.random.normal(ks[7], (1, out_dim), jnp.float32),
      # LayerNorm: gamma=1, beta=0 (torch default init)
      "ln1_g": jnp.ones((1, hidden_dim), jnp.float32),
      "ln1_b": jnp.zeros((1, hidden_dim), jnp.float32),
      "ln2_g": jnp.ones((1, hidden_dim), jnp.float32),
      "ln2_b": jnp.zeros((1, hidden_dim), jnp.float32),
      # nn.PReLU() default: single shared parameter a = 0.25
      "prelu_a": jnp.full((1, 1), 0.25, jnp.float32),
  }


def reference_forward(x, p):
  """Pure-JAX f32 reference mirroring the PyTorch module."""
  def prelu(v): return jnp.where(v >= 0, v, p["prelu_a"][0, 0] * v)
  def ln(v, g, b):
    mu = jnp.mean(v, -1, keepdims=True)
    var = jnp.mean((v - mu) ** 2, -1, keepdims=True)
    return (v - mu) / jnp.sqrt(var + LN_EPS) * g + b
  h = x @ p["w_in"] + p["b_in"]
  y = prelu(ln(h, p["ln1_g"], p["ln1_b"])) @ p["w1"] + p["b1"]
  y = prelu(ln(y, p["ln2_g"], p["ln2_b"])) @ p["w2"] + p["b2"]
  y = y + h
  return prelu(y @ p["w_out"] + p["b_out"])


if __name__ == "__main__":
  key = jax.random.PRNGKey(0)
  k_x, k_p = jax.random.split(key)

  batch, seq = 2, 8
  in_dim, hidden_dim, out_dim = 16, 32, 16

  x = jax.random.normal(k_x, (batch, seq, in_dim), jnp.float32)
  params = init_params(k_p, in_dim, hidden_dim, out_dim)
  prep = prepare_params(params)          # one-time pad + bf16 cast

  x2d = x.reshape(batch * seq, in_dim)   # glue reshape outside the kernel
  out = mlp_block_forward(x2d, prep)
  out = jax.block_until_ready(out).reshape(batch, seq, out_dim)

  ref = reference_forward(x2d, params).reshape(batch, seq, out_dim)
  assert out.shape == (batch, seq, out_dim)
  # bf16 MXU inputs with f32 accumulation vs. an all-f32 reference -> loose tol.
  assert jnp.allclose(out, ref, atol=2e-2, rtol=2e-2), "mismatch vs reference"

  print("KERNEL_OK")
</pallas_src>

<mosaic_0001>
module attributes {stable_mosaic.version = 11 : i64} {
  func.func @_mlp_block_kernel(%arg0: i32, %arg1: memref<16x128xbf16, #tpu.memory_space<vmem>>, %arg2: memref<128x128xbf16, #tpu.memory_space<vmem>>, %arg3: memref<128x128xbf16, #tpu.memory_space<vmem>>, %arg4: memref<128x128xbf16, #tpu.memory_space<vmem>>, %arg5: memref<128x128xbf16, #tpu.memory_space<vmem>>, %arg6: memref<8x128xf32, #tpu.memory_space<vmem>>, %arg7: memref<1x128xf32, #tpu.memory_space<vmem>>, %arg8: memref<1x1xf32, #tpu.memory_space<smem>>, %arg9: memref<16x128xf32, #tpu.memory_space<vmem>>) attributes {dimension_semantics = [#tpu.dimension_semantics<parallel>], iteration_bounds = array<i64: 1>, scalar_prefetch = 0 : i64, scratch_operands = 0 : i64, tpu.core_type = #tpu.core_type<tc>, window_params = [{transform_indices = @transform_0, window_bounds = array<i64: 16, 128>}, {pipeline_mode = #tpu.pipeline_mode<synchronous>, transform_indices = @transform_1, window_bounds = array<i64: 128, 128>}, {pipeline_mode = #tpu.pipeline_mode<synchronous>, transform_indices = @transform_2, window_bounds = array<i64: 128, 128>}, {pipeline_mode = #tpu.pipeline_mode<synchronous>, transform_indices = @transform_3, window_bounds = array<i64: 128, 128>}, {pipeline_mode = #tpu.pipeline_mode<synchronous>, transform_indices = @transform_4, window_bounds = array<i64: 128, 128>}, {pipeline_mode = #tpu.pipeline_mode<synchronous>, transform_indices = @transform_5, window_bounds = array<i64: 8, 128>}, {pipeline_mode = #tpu.pipeline_mode<synchronous>, transform_indices = @transform_6, window_bounds = array<i64: 1, 128>}, {transform_indices = @transform_7, window_bounds = array<i64: 1, 1>}, {transform_indices = @transform_8, window_bounds = array<i64: 16, 128>}]} {
    %c0 = arith.constant 0 : index
    %c0_0 = arith.constant 0 : index
    %0 = memref.load %arg8[%c0, %c0_0] : memref<1x1xf32, #tpu.memory_space<smem>>
    %c0_1 = arith.constant 0 : index
    %c0_2 = arith.constant 0 : index
    %1 = vector.load %arg6[%c0_1, %c0_2] : memref<8x128xf32, #tpu.memory_space<vmem>>, vector<1x128xf32>
    %c1 = arith.constant 1 : index
    %c0_3 = arith.constant 0 : index
    %2 = vector.load %arg6[%c1, %c0_3] : memref<8x128xf32, #tpu.memory_space<vmem>>, vector<1x128xf32>
    %c2 = arith.constant 2 : index
    %c0_4 = arith.constant 0 : index
    %3 = vector.load %arg6[%c2, %c0_4] : memref<8x128xf32, #tpu.memory_space<vmem>>, vector<1x128xf32>
    %c3 = arith.constant 3 : index
    %c0_5 = arith.constant 0 : index
    %4 = vector.load %arg6[%c3, %c0_5] : memref<8x128xf32, #tpu.memory_space<vmem>>, vector<1x128xf32>
    %c4 = arith.constant 4 : index
    %c0_6 = arith.constant 0 : index
    %5 = vector.load %arg6[%c4, %c0_6] : memref<8x128xf32, #tpu.memory_space<vmem>>, vector<1x128xf32>
    %c5 = arith.constant 5 : index
    %c0_7 = arith.constant 0 : index
    %6 = vector.load %arg6[%c5, %c0_7] : memref<8x128xf32, #tpu.memory_space<vmem>>, vector<1x128xf32>
    %c6 = arith.constant 6 : index
    %c0_8 = arith.constant 0 : index
    %7 = vector.load %arg6[%c6, %c0_8] : memref<8x128xf32, #tpu.memory_space<vmem>>, vector<1x128xf32>
    %c0_9 = arith.constant 0 : index
    %c0_10 = arith.constant 0 : index
    %8 = vector.load %arg1[%c0_9, %c0_10] : memref<16x128xbf16, #tpu.memory_space<vmem>>, vector<16x128xbf16>
    %c0_11 = arith.constant 0 : index
    %c0_12 = arith.constant 0 : index
    %9 = vector.load %arg2[%c0_11, %c0_12] : memref<128x128xbf16, #tpu.memory_space<vmem>>, vector<128x128xbf16>
    %cst = arith.constant dense<0.000000e+00> : vector<16x128xf32>
    %10 = tpu.matmul %8, %9, %cst {dimension_numbers = #tpu.dot_dimension_numbers<[1], [0], [0], [1], [0, 0, 1, 1], [], []>} : vector<16x128xbf16>, vector<128x128xbf16>, vector<16x128xf32> -> vector<16x128xf32>
    %11 = vector.broadcast %1 : vector<1x128xf32> to vector<16x128xf32>
    %12 = arith.addf %10, %11 : vector<16x128xf32>
    %cst_13 = arith.constant dense<0.000000e+00> : vector<16xf32>
    %13 = vector.multi_reduction <add>, %12, %cst_13 [1] : vector<16x128xf32> to vector<16xf32>
    %14 = vector.shape_cast %13 : vector<16xf32> to vector<16x1xf32>
    %cst_14 = arith.constant 3.125000e-02 : f32
    %15 = vector.broadcast %cst_14 : f32 to vector<16x1xf32>
    %16 = arith.mulf %14, %15 : vector<16x1xf32>
    %17 = arith.mulf %12, %12 : vector<16x128xf32>
    %cst_15 = arith.constant dense<0.000000e+00> : vector<16xf32>
    %18 = vector.multi_reduction <add>, %17, %cst_15 [1] : vector<16x128xf32> to vector<16xf32>
    %19 = vector.shape_cast %18 : vector<16xf32> to vector<16x1xf32>
    %cst_16 = arith.constant 3.125000e-02 : f32
    %20 = vector.broadcast %cst_16 : f32 to vector<16x1xf32>
    %21 = arith.mulf %19, %20 : vector<16x1xf32>
    %22 = arith.mulf %16, %16 : vector<16x1xf32>
    %23 = arith.subf %21, %22 : vector<16x1xf32>
    %cst_17 = arith.constant 0.000000e+00 : f32
    %24 = vector.broadcast %cst_17 : f32 to vector<16x1xf32>
    %25 = arith.maximumf %23, %24 : vector<16x1xf32>
    %26 = vector.broadcast %16 : vector<16x1xf32> to vector<16x128xf32>
    %27 = arith.subf %12, %26 : vector<16x128xf32>
    %cst_18 = arith.constant 9.99999974E-6 : f32
    %28 = vector.broadcast %cst_18 : f32 to vector<16x1xf32>
    %29 = arith.addf %25, %28 : vector<16x1xf32>
    %30 = math.rsqrt %29 : vector<16x1xf32>
    %31 = vector.broadcast %30 : vector<16x1xf32> to vector<16x128xf32>
    %32 = arith.mulf %27, %31 : vector<16x128xf32>
    %33 = vector.broadcast %2 : vector<1x128xf32> to vector<16x128xf32>
    %34 = arith.mulf %32, %33 : vector<16x128xf32>
    %35 = vector.broadcast %3 : vector<1x128xf32> to vector<16x128xf32>
    %36 = arith.addf %34, %35 : vector<16x128xf32>
    %cst_19 = arith.constant 0.000000e+00 : f32
    %37 = vector.broadcast %cst_19 : f32 to vector<16x128xf32>
    %38 = arith.cmpf oge, %36, %37 : vector<16x128xf32>
    %39 = vector.broadcast %0 : f32 to vector<16x128xf32>
    %40 = arith.mulf %39, %36 : vector<16x128xf32>
    %41 = arith.select %38, %36, %40 : vector<16x128xi1>, vector<16x128xf32>
    %42 = arith.truncf %41 : vector<16x128xf32> to vector<16x128xbf16>
    %c0_20 = arith.constant 0 : index
    %c0_21 = arith.constant 0 : index
    %43 = vector.load %arg3[%c0_20, %c0_21] : memref<128x128xbf16, #tpu.memory_space<vmem>>, vector<128x128xbf16>
    %cst_22 = arith.constant dense<0.000000e+00> : vector<16x128xf32>
    %44 = tpu.matmul %42, %43, %cst_22 {dimension_numbers = #tpu.dot_dimension_numbers<[1], [0], [0], [1], [0, 0, 1, 1], [], []>} : vector<16x128xbf16>, vector<128x128xbf16>, vector<16x128xf32> -> vector<16x128xf32>
    %45 = vector.broadcast %4 : vector<1x128xf32> to vector<16x128xf32>
    %46 = arith.addf %44, %45 : vector<16x128xf32>
    %cst_23 = arith.constant dense<0.000000e+00> : vector<16xf32>
    %47 = vector.multi_reduction <add>, %46, %cst_23 [1] : vector<16x128xf32> to vector<16xf32>
    %48 = vector.shape_cast %47 : vector<16xf32> to vector<16x1xf32>
    %cst_24 = arith.constant 3.125000e-02 : f32
    %49 = vector.broadcast %cst_24 : f32 to vector<16x1xf32>
    %50 = arith.mulf %48, %49 : vector<16x1xf32>
    %51 = arith.mulf %46, %46 : vector<16x128xf32>
    %cst_25 = arith.constant dense<0.000000e+00> : vector<16xf32>
    %52 = vector.multi_reduction <add>, %51, %cst_25 [1] : vector<16x128xf32> to vector<16xf32>
    %53 = vector.shape_cast %52 : vector<16xf32> to vector<16x1xf32>
    %cst_26 = arith.constant 3.125000e-02 : f32
    %54 = vector.broadcast %cst_26 : f32 to vector<16x1xf32>
    %55 = arith.mulf %53, %54 : vector<16x1xf32>
    %56 = arith.mulf %50, %50 : vector<16x1xf32>
    %57 = arith.subf %55, %56 : vector<16x1xf32>
    %cst_27 = arith.constant 0.000000e+00 : f32
    %58 = vector.broadcast %cst_27 : f32 to vector<16x1xf32>
    %59 = arith.maximumf %57, %58 : vector<16x1xf32>
    %60 = vector.broadcast %50 : vector<16x1xf32> to vector<16x128xf32>
    %61 = arith.subf %46, %60 : vector<16x128xf32>
    %cst_28 = arith.constant 9.99999974E-6 : f32
    %62 = vector.broadcast %cst_28 : f32 to vector<16x1xf32>
    %63 = arith.addf %59, %62 : vector<16x1xf32>
    %64 = math.rsqrt %63 : vector<16x1xf32>
    %65 = vector.broadcast %64 : vector<16x1xf32> to vector<16x128xf32>
    %66 = arith.mulf %61, %65 : vector<16x128xf32>
    %67 = vector.broadcast %5 : vector<1x128xf32> to vector<16x128xf32>
    %68 = arith.mulf %66, %67 : vector<16x128xf32>
    %69 = vector.broadcast %6 : vector<1x128xf32> to vector<16x128xf32>
    %70 = arith.addf %68, %69 : vector<16x128xf32>
    %cst_29 = arith.constant 0.000000e+00 : f32
    %71 = vector.broadcast %cst_29 : f32 to vector<16x128xf32>
    %72 = arith.cmpf oge, %70, %71 : vector<16x128xf32>
    %73 = vector.broadcast %0 : f32 to vector<16x128xf32>
    %74 = arith.mulf %73, %70 : vector<16x128xf32>
    %75 = arith.select %72, %70, %74 : vector<16x128xi1>, vector<16x128xf32>
    %76 = arith.truncf %75 : vector<16x128xf32> to vector<16x128xbf16>
    %c0_30 = arith.constant 0 : index
    %c0_31 = arith.constant 0 : index
    %77 = vector.load %arg4[%c0_30, %c0_31] : memref<128x128xbf16, #tpu.memory_space<vmem>>, vector<128x128xbf16>
    %cst_32 = arith.constant dense<0.000000e+00> : vector<16x128xf32>
    %78 = tpu.matmul %76, %77, %cst_32 {dimension_numbers = #tpu.dot_dimension_numbers<[1], [0], [0], [1], [0, 0, 1, 1], [], []>} : vector<16x128xbf16>, vector<128x128xbf16>, vector<16x128xf32> -> vector<16x128xf32>
    %79 = vector.broadcast %7 : vector<1x128xf32> to vector<16x128xf32>
    %80 = arith.addf %78, %79 : vector<16x128xf32>
    %81 = arith.addf %80, %12 : vector<16x128xf32>
    %82 = arith.truncf %81 : vector<16x128xf32> to vector<16x128xbf16>
    %c0_33 = arith.constant 0 : index
    %c0_34 = arith.constant 0 : index
    %83 = vector.load %arg5[%c0_33, %c0_34] : memref<128x128xbf16, #tpu.memory_space<vmem>>, vector<128x128xbf16>
    %cst_35 = arith.constant dense<0.000000e+00> : vector<16x128xf32>
    %84 = tpu.matmul %82, %83, %cst_35 {dimension_numbers = #tpu.dot_dimension_numbers<[1], [0], [0], [1], [0, 0, 1, 1], [], []>} : vector<16x128xbf16>, vector<128x128xbf16>, vector<16x128xf32> -> vector<16x128xf32>
    %c0_36 = arith.constant 0 : index
    %c0_37 = arith.constant 0 : index
    %85 = vector.load %arg7[%c0_36, %c0_37] : memref<1x128xf32, #tpu.memory_space<vmem>>, vector<1x128xf32>
    %86 = vector.broadcast %85 : vector<1x128xf32> to vector<16x128xf32>
    %87 = arith.addf %84, %86 : vector<16x128xf32>
    %cst_38 = arith.constant 0.000000e+00 : f32
    %88 = vector.broadcast %cst_38 : f32 to vector<16x128xf32>
    %89 = arith.cmpf oge, %87, %88 : vector<16x128xf32>
    %90 = vector.broadcast %0 : f32 to vector<16x128xf32>
    %91 = arith.mulf %90, %87 : vector<16x128xf32>
    %92 = arith.select %89, %87, %91 : vector<16x128xi1>, vector<16x128xf32>
    %c0_39 = arith.constant 0 : index
    %c0_40 = arith.constant 0 : index
    %93 = vector.load %arg9[%c0_39, %c0_40] : memref<16x128xf32, #tpu.memory_space<vmem>>, vector<16x128xf32>
    tpu.vector_store %arg9[%c0_39, %c0_40], %92 {strides = array<i32>} : memref<16x128xf32, #tpu.memory_space<vmem>>, vector<16x128xf32>,
    return
  }
  func.func @transform_0(%arg0: i32) -> (i32, i32) {
    %c0_i32 = arith.constant 0 : i32
    %c0_i32_0 = arith.constant 0 : i32
    return %arg0, %c0_i32 : i32, i32
  }
  func.func @transform_1(%arg0: i32) -> (i32, i32) {
    %c0_i32 = arith.constant 0 : i32
    %c0_i32_0 = arith.constant 0 : i32
    %c0_i32_1 = arith.constant 0 : i32
    return %c0_i32, %c0_i32_0 : i32, i32
  }
  func.func @transform_2(%arg0: i32) -> (i32, i32) {
    %c0_i32 = arith.constant 0 : i32
    %c0_i32_0 = arith.constant 0 : i32
    %c0_i32_1 = arith.constant 0 : i32
    return %c0_i32, %c0_i32_0 : i32, i32
  }
  func.func @transform_3(%arg0: i32) -> (i32, i32) {
    %c0_i32 = arith.constant 0 : i32
    %c0_i32_0 = arith.constant 0 : i32
    %c0_i32_1 = arith.constant 0 : i32
    return %c0_i32, %c0_i32_0 : i32, i32
  }
  func.func @transform_4(%arg0: i32) -> (i32, i32) {
    %c0_i32 = arith.constant 0 : i32
    %c0_i32_0 = arith.constant 0 : i32
    %c0_i32_1 = arith.constant 0 : i32
    return %c0_i32, %c0_i32_0 : i32, i32
  }
  func.func @transform_5(%arg0: i32) -> (i32, i32) {
    %c0_i32 = arith.constant 0 : i32
    %c0_i32_0 = arith.constant 0 : i32
    %c0_i32_1 = arith.constant 0 : i32
    return %c0_i32, %c0_i32_0 : i32, i32
  }
  func.func @transform_6(%arg0: i32) -> (i32, i32) {
    %c0_i32 = arith.constant 0 : i32
    %c0_i32_0 = arith.constant 0 : i32
    %c0_i32_1 = arith.constant 0 : i32
    return %c0_i32, %c0_i32_0 : i32, i32
  }
  func.func @transform_7(%arg0: i32) -> (i32, i32) {
    %c0_i32 = arith.constant 0 : i32
    %c0_i32_0 = arith.constant 0 : i32
    %c0_i32_1 = arith.constant 0 : i32
    return %c0_i32, %c0_i32_0 : i32, i32
  }
  func.func @transform_8(%arg0: i32) -> (i32, i32) {
    %c0_i32 = arith.constant 0 : i32
    %c0_i32_0 = arith.constant 0 : i32
    return %arg0, %c0_i32 : i32, i32
  }
}

</mosaic_0001>

<llo_original>
// kernel: tpu_custom_call.1
$region0: #{tpu_custom_call.1}
  #allocation0 [shape = 'u32[]', space=smem, size = 0x4, offset = 0x4, fixed_abs, tag = 'smem constant byte address 0x4 - core index']
  #allocation1 [shape = 'u32[144,128]{1,0:T(1,128)}', space=vmem, size = 0x12000, scoped, tag = 'internal scratch']
  #allocation2 [shape = 'f32[1,1]{1,0:T(1,128)S(6)}', space=smem, size = 0x200, scoped, tag = 'scoped memory for tpu_custom_call.1']
  %s0 = inlined_call_operand.hbm [shape: bf16[16,128], index: 0, kind: input, shape index: {}]
  %s1 = inlined_call_operand.hbm [shape: bf16[128,128], index: 1, kind: input, shape index: {}]
  %s2 = inlined_call_operand.hbm [shape: bf16[128,128], index: 2, kind: input, shape index: {}]
  %s3 = inlined_call_operand.hbm [shape: bf16[128,128], index: 3, kind: input, shape index: {}]
  %s4 = inlined_call_operand.hbm [shape: bf16[128,128], index: 4, kind: input, shape index: {}]
  %s5 = inlined_call_operand.vmem [shape: f32[8,128], index: 5, kind: input, shape index: {}]
  %s6 = inlined_call_operand.vmem [shape: f32[1,128], index: 6, kind: input, shape index: {}]
  %s7 = inlined_call_operand.<no memory space> [shape: f32[1,1], index: 7, kind: input, shape index: {}]
  %s8 = inlined_call_operand.hbm [shape: f32[16,128], index: 8, kind: output, shape index: {}]
  %s9 = sld [smem:[#allocation0]]
  $region62: #{tpu_custom_call.1} parent=0
    _
  %s11 = ssub.s32 1, %s9
  %s12 = scalar_select 0, %s11, %s9
  %13 = sst [smem:[#allocation2]] %s7
  $region1: #{tpu_custom_call.1} parent=0
    #allocation3 [shape = 'u8[4096]{0}', space=vmem, size = 0x1000, scoped, tag = 'input window, operand 0, single buffered']
    #allocation4 [shape = 's32[1]{0}', space=sflag, size = 0x4, scoped, tag = 'scoped memory for tpu_custom_call.1']
    #allocation5 [shape = 's32[1]{0}', space=sflag, size = 0x4, scoped, tag = 'scoped memory for tpu_custom_call.1']
    #allocation6 [shape = 'u8[32768]{0}', space=vmem, size = 0x8000, scoped, tag = 'input window, operand 1, single buffered']
    #allocation7 [shape = 's32[1]{0}', space=sflag, size = 0x4, scoped, tag = 'scoped memory for tpu_custom_call.1']
    #allocation8 [shape = 'u8[32768]{0}', space=vmem, size = 0x8000, scoped, tag = 'input window, operand 2, single buffered']
    #allocation9 [shape = 'u8[32768]{0}', space=vmem, size = 0x8000, scoped, tag = 'input window, operand 3, single buffered']
    #allocation10 [shape = 's32[1]{0}', space=sflag, size = 0x4, scoped, tag = 'scoped memory for tpu_custom_call.1']
    #allocation11 [shape = 'u8[32768]{0}', space=vmem, size = 0x8000, scoped, tag = 'input window, operand 4, single buffered']
    #allocation12 [shape = 'u8[8192]{0}', space=vmem, size = 0x2000, scoped, tag = 'output window, operand 0, single buffered']
    %14 = vsyncpa [#allocation4], 0
    %15 = vsyncpa [#allocation7], 0
    %16 = vsyncpa [#allocation10], 0
    %17 = vsyncpa [#allocation5], 0
    // Predicated region
    $region2: #{tpu_custom_call.1} parent=1 // pred_check
      _
    $region3: #{tpu_custom_call.1} parent=1 // pred_check_branch
      %19 = sbr.rel (0) target = $region5
    $region4: #{tpu_custom_call.1} parent=1 // pred_region
      %s21 = ssub.s32 128, 128
      %22 = vsyncadd [#allocation4], %s21
      %s23 = sshll.u32 [#allocation3], 4
      %s24 = int_to_ptr.vmem [resolvable:$true] %s23
      %29 = dma.hbm_to_vmem [thread:$0]  %s0, 128, %s24, [#allocation4], 64, 64, 4
    $region5: #{tpu_custom_call.1} parent=1 // pred_fallthru
      _
    // Predicated region
    $region6: #{tpu_custom_call.1} parent=1 // pred_check
      _
    $region7: #{tpu_custom_call.1} parent=1 // pred_check_branch
      %31 = sbr.rel (0) target = $region9
    $region8: #{tpu_custom_call.1} parent=1 // pred_region
      %s33 = ssub.s32 1024, 1024
      %34 = vsyncadd [#allocation7], %s33
      %s35 = sshll.u32 [#allocation6], 4
      %s36 = int_to_ptr.vmem [resolvable:$true] %s35
      %41 = dma.hbm_to_vmem [thread:$0]  %s1, 1024, %s36, [#allocation7], 64, 64, 4
    $region9: #{tpu_custom_call.1} parent=1 // pred_fallthru
      _
    // Predicated region
    $region10: #{tpu_custom_call.1} parent=1 // pred_check
      _
    $region11: #{tpu_custom_call.1} parent=1 // pred_check_branch
      %43 = sbr.rel (0) target = $region13
    $region12: #{tpu_custom_call.1} parent=1 // pred_region
      %s45 = ssub.s32 1024, 1024
      %46 = vsyncadd [#allocation7], %s45
      %s47 = sshll.u32 [#allocation8], 4
      %s48 = int_to_ptr.vmem [resolvable:$true] %s47
      %53 = dma.hbm_to_vmem [thread:$0]  %s2, 1024, %s48, [#allocation7], 64, 64, 4
    $region13: #{tpu_custom_call.1} parent=1 // pred_fallthru
      _
    // Predicated region
    $region14: #{tpu_custom_call.1} parent=1 // pred_check
      _
    $region15: #{tpu_custom_call.1} parent=1 // pred_check_branch
      %55 = sbr.rel (0) target = $region17
    $region16: #{tpu_custom_call.1} parent=1 // pred_region
      %s57 = ssub.s32 1024, 1024
      %58 = vsyncadd [#allocation10], %s57
      %s59 = sshll.u32 [#allocation9], 4
      %s60 = int_to_ptr.vmem [resolvable:$true] %s59
      %65 = dma.hbm_to_vmem [thread:$0]  %s3, 1024, %s60, [#allocation10], 64, 64, 4
    $region17: #{tpu_custom_call.1} parent=1 // pred_fallthru
      _
    // Predicated region
    $region18: #{tpu_custom_call.1} parent=1 // pred_check
      _
    $region19: #{tpu_custom_call.1} parent=1 // pred_check_branch
      %67 = sbr.rel (0) target = $region21
    $region20: #{tpu_custom_call.1} parent=1 // pred_region
      %s69 = ssub.s32 1024, 1024
      %70 = vsyncadd [#allocation10], %s69
      %s71 = sshll.u32 [#allocation11], 4
      %s72 = int_to_ptr.vmem [resolvable:$true] %s71
      %77 = dma.hbm_to_vmem [thread:$0]  %s4, 1024, %s72, [#allocation10], 64, 64, 4
    $region21: #{tpu_custom_call.1} parent=1 // pred_fallthru
      _
    // Predicated region
    $region22: #{tpu_custom_call.1} parent=1 // pred_check
      _
    $region23: #{tpu_custom_call.1} parent=1 // pred_check_branch
      %79 = sbr.rel (0) target = $region25
    $region24: #{tpu_custom_call.1} parent=1 // pred_region
      _
    $region25: #{tpu_custom_call.1} parent=1 // pred_fallthru
      _
    // Predicated region
    $region26: #{tpu_custom_call.1} parent=1 // pred_check
      _
    $region27: #{tpu_custom_call.1} parent=1 // pred_check_branch
      %81 = sbr.rel (0) target = $region29
    $region28: #{tpu_custom_call.1} parent=1 // pred_region
      _
    $region29: #{tpu_custom_call.1} parent=1 // pred_fallthru
      _
    // Predicated region
    $region30: #{tpu_custom_call.1} parent=1 // pred_check
      _
    $region31: #{tpu_custom_call.1} parent=1 // pred_check_branch
      %83 = sbr.rel (0) target = $region33
    $region32: #{tpu_custom_call.1} parent=1 // pred_region
      _
    $region33: #{tpu_custom_call.1} parent=1 // pred_fallthru
      _
    // Predicated region
    $region34: #{tpu_custom_call.1} parent=1 // pred_check
      _
    $region35: #{tpu_custom_call.1} parent=1 // pred_check_branch
      %85 = sbr.rel (0) target = $region37
    $region36: #{tpu_custom_call.1} parent=1 // pred_region
      %86 = dma.done [#allocation4], 128
    $region37: #{tpu_custom_call.1} parent=1 // pred_fallthru
      _
    // Predicated region
    $region38: #{tpu_custom_call.1} parent=1 // pred_check
      _
    $region39: #{tpu_custom_call.1} parent=1 // pred_check_branch
      %88 = sbr.rel (0) target = $region41
    $region40: #{tpu_custom_call.1} parent=1 // pred_region
      %89 = dma.done [#allocation7], 1024
    $region41: #{tpu_custom_call.1} parent=1 // pred_fallthru
      _
    // Predicated region
    $region42: #{tpu_custom_call.1} parent=1 // pred_check
      _
    $region43: #{tpu_custom_call.1} parent=1 // pred_check_branch
      %91 = sbr.rel (0) target = $region45
    $region44: #{tpu_custom_call.1} parent=1 // pred_region
      %92 = dma.done [#allocation7], 1024
    $region45: #{tpu_custom_call.1} parent=1 // pred_fallthru
      _
    // Predicated region
    $region46: #{tpu_custom_call.1} parent=1 // pred_check
      _
    $region47: #{tpu_custom_call.1} parent=1 // pred_check_branch
      %94 = sbr.rel (0) target = $region49
    $region48: #{tpu_custom_call.1} parent=1 // pred_region
      %95 = dma.done [#allocation10], 1024
    $region49: #{tpu_custom_call.1} parent=1 // pred_fallthru
      _
    // Predicated region
    $region50: #{tpu_custom_call.1} parent=1 // pred_check
      _
    $region51: #{tpu_custom_call.1} parent=1 // pred_check_branch
      %97 = sbr.rel (0) target = $region53
    $region52: #{tpu_custom_call.1} parent=1 // pred_region
      %98 = dma.done [#allocation10], 1024
    $region53: #{tpu_custom_call.1} parent=1 // pred_fallthru
      _
    %s100 = sld [smem:[#allocation2]]
    %v101 = vld [vmem:[%s5] sm:$0x1]
    %v102 = vld [vmem:[%s5 + $0x1] sm:$0x1]
    %v103 = vld [vmem:[%s5 + $0x2] sm:$0x1]
    %v104 = vld [vmem:[%s5 + $0x3] sm:$0x1]
    %v105 = vld [vmem:[%s5 + $0x4] sm:$0x1]
    %v106 = vld [vmem:[%s5 + $0x5] sm:$0x1]
    %v107 = vld [vmem:[%s5 + $0x6] sm:$0x1]
    %v108 = vld [vmem:[#allocation3] sm:$0xf]
    %v109 = vld [vmem:[#allocation3 + $0x4] sm:$0xf]
    %v110 = vld [vmem:[#allocation6] sm:$0xf]
    %v111 = vld [vmem:[#allocation6 + $0x4] sm:$0xf]
    %v112 = vld [vmem:[#allocation6 + $0x8] sm:$0xf]
    %v113 = vld [vmem:[#allocation6 + $0xc] sm:$0xf]
    %v114 = vld [vmem:[#allocation6 + $0x10] sm:$0xf]
    %v115 = vld [vmem:[#allocation6 + $0x14] sm:$0xf]
    %v116 = vld [vmem:[#allocation6 + $0x18] sm:$0xf]
    %v117 = vld [vmem:[#allocation6 + $0x1c] sm:$0xf]
    %v118 = vld [vmem:[#allocation6 + $0x20] sm:$0xf]
    %v119 = vld [vmem:[#allocation6 + $0x24] sm:$0xf]
    %v120 = vld [vmem:[#allocation6 + $0x28] sm:$0xf]
    %v121 = vld [vmem:[#allocation6 + $0x2c] sm:$0xf]
    %v122 = vld [vmem:[#allocation6 + $0x30] sm:$0xf]
    %v123 = vld [vmem:[#allocation6 + $0x34] sm:$0xf]
    %v124 = vld [vmem:[#allocation6 + $0x38] sm:$0xf]
    %v125 = vld [vmem:[#allocation6 + $0x3c] sm:$0xf]
    %v126 = vlaneseq
    %v127 = vshrl.u32 %v126, 7
    %v128 = vsub.s32 0, %v127
    %v129 = vrot.slane %v101, %v128
    %v132 = vunpack.c.l.b16 %v108
    %v133 = vunpack.c.l.b16 %v109
    %v134 = vpack.c.b16 %v133, %v132
    %v152 = vunpack.c.l.b16 %v110
    %v153 = vunpack.c.l.b16 %v111
    %v154 = vunpack.c.l.b16 %v112
    %v155 = vunpack.c.l.b16 %v113
    %v156 = vunpack.c.l.b16 %v114
    %v157 = vunpack.c.l.b16 %v115
    %v158 = vunpack.c.l.b16 %v116
    %v159 = vunpack.c.l.b16 %v117
    %v160 = vunpack.c.l.b16 %v118
    %v161 = vunpack.c.l.b16 %v119
    %v162 = vunpack.c.l.b16 %v120
    %v163 = vunpack.c.l.b16 %v121
    %v164 = vunpack.c.l.b16 %v122
    %v165 = vunpack.c.l.b16 %v123
    %v166 = vunpack.c.l.b16 %v124
    %v167 = vunpack.c.l.b16 %v125
    %v168 = vpack.c.b16 %v153, %v152
    %v169 = vpack.c.b16 %v155, %v154
    %v170 = vpack.c.b16 %v157, %v156
    %v171 = vpack.c.b16 %v159, %v158
    %v172 = vpack.c.b16 %v161, %v160
    %v173 = vpack.c.b16 %v163, %v162
    %v174 = vpack.c.b16 %v165, %v164
    %v175 = vpack.c.b16 %v167, %v166
    %184 = vmatprep.subr.bf16.mxu0 0
    %185 = vmatpush1.bf16.msra.mxu0 %v175
    %186 = vmatprep.subr.bf16.mxu0 0
    %187 = vmatpush1.bf16.msra.mxu0 %v174
    %188 = vmatprep.subr.bf16.mxu0 0
    %189 = vmatpush1.bf16.msra.mxu0 %v173
    %190 = vmatprep.subr.bf16.mxu0 0
    %191 = vmatpush1.bf16.msra.mxu0 %v172
    %192 = vmatprep.subr.bf16.mxu0 0
    %193 = vmatpush1.bf16.msra.mxu0 %v171
    %194 = vmatprep.subr.bf16.mxu0 0
    %195 = vmatpush1.bf16.msra.mxu0 %v170
    %196 = vmatprep.subr.bf16.mxu0 0
    %197 = vmatpush1.bf16.msra.mxu0 %v169
    %198 = vmatprep.subr.bf16.mxu0 0
    %199 = vmatpush1.bf16.msra.mxu0 %v168
    %200 = vmatprep.subr.bf16.mxu0 0
    %201 = vmatpush2.bf16.msra.mxu0 0
    %202 = vmatprep.subr.bf16.mxu0 0
    %203 = vmatpush2.bf16.msra.mxu0 0
    %204 = vmatprep.subr.bf16.mxu0 0
    %205 = vmatpush2.bf16.msra.mxu0 0
    %206 = vmatprep.subr.bf16.mxu0 0
    %207 = vmatpush2.bf16.msra.mxu0 0
    %208 = vmatprep.subr.bf16.mxu0 0
    %209 = vmatpush2.bf16.msra.mxu0 0
    %210 = vmatprep.subr.bf16.mxu0 0
    %211 = vmatpush2.bf16.msra.mxu0 0
    %212 = vmatprep.subr.bf16.mxu0 0
    %213 = vmatpush2.bf16.msra.mxu0 0
    %214 = vmatprep.subr.bf16.mxu0 0
    %215 = vmatpush2.bf16.msra.mxu0 0
    %216 = vmatprep.mubr.bf16.mxu0 0
    %217 = vmatmul.mubr.bf16.gmra.mxu0 %v134
    %v218 = vpop.f32.mrf.mxu0
    %v219 = vadd.f32 %v129, %v218
    %v220 = vpop.f32.mrf.mxu0
    %v221 = vpop.f32.mrf.mxu0
    %v222 = vadd.f32 %v129, %v221
    %v223 = vpop.f32.mrf.mxu0
    %224 = vdwg.mxu0
    %225 = vadd.xlane.f32.xlu0 %v219
    %v226 = vpop.xlane.xlu0 %225
    %227 = vadd.xlane.f32.xlu0 %v222
    %v228 = vpop.xlane.xlu0 %227
    %v229 = vmul.f32 %v226, 0.03125
    %v230 = vmul.f32 %v228, 0.03125
    %v231 = vmul.f32 %v219, %v219
    %v232 = vmul.f32 %v222, %v222
    %233 = vadd.xlane.f32.xlu0 %v231
    %v234 = vpop.xlane.xlu0 %233
    %235 = vadd.xlane.f32.xlu0 %v232
    %v236 = vpop.xlane.xlu0 %235
    %v237 = vmul.f32 %v234, 0.03125
    %v238 = vmul.f32 %v236, 0.03125
    %v239 = vmul.f32 %v229, %v229
    %v240 = vmul.f32 %v230, %v230
    %v241 = vsub.f32 %v237, %v239
    %v242 = vsub.f32 %v238, %v240
    %v243 = vmax.f32 %v241, 0.0
    %v244 = vmax.f32 %v242, 0.0
    %v245 = vsub.f32 %v219, %v229
    %v246 = vsub.f32 %v222, %v230
    %v247 = vadd.f32 %v243, 1e-05
    %v248 = vadd.f32 %v244, 1e-05
    %v249 = vrsqrt.pop %v247
    %v250 = vrsqrt.pop %v248
    %v251 = vmul.f32 %v245, %v249
    %v252 = vmul.f32 %v246, %v250
    %v253 = vlaneseq
    %v254 = vshrl.u32 %v253, 7
    %v255 = vsub.s32 0, %v254
    %v256 = vrot.slane %v102, %v255
    %v257 = vmul.f32 %v251, %v256
    %v258 = vmul.f32 %v252, %v256
    %v259 = vlaneseq
    %v260 = vshrl.u32 %v259, 7
    %v261 = vsub.s32 0, %v260
    %v262 = vrot.slane %v103, %v261
    %v263 = vadd.f32 %v257, %v262
    %v264 = vadd.f32 %v258, %v262
    %vm265 = vcmp.ge.f32.partialorder %v263, 0.0
    %vm266 = vcmp.ge.f32.partialorder %v264, 0.0
    %v267 = vstv %s100
    %v268 = vmul.f32 %v267, %v263
    %v269 = vmul.f32 %v267, %v264
    %v270 = vsel %vm265, %v263, %v268
    %v271 = vsel %vm266, %v264, %v269
    %v272 = vpack.c.bf16 %v271, %v270
    %v273 = vld [vmem:[#allocation8] sm:$0xf]
    %v274 = vld [vmem:[#allocation8 + $0x4] sm:$0xf]
    %v275 = vld [vmem:[#allocation8 + $0x8] sm:$0xf]
    %v276 = vld [vmem:[#allocation8 + $0xc] sm:$0xf]
    %v277 = vld [vmem:[#allocation8 + $0x10] sm:$0xf]
    %v278 = vld [vmem:[#allocation8 + $0x14] sm:$0xf]
    %v279 = vld [vmem:[#allocation8 + $0x18] sm:$0xf]
    %v280 = vld [vmem:[#allocation8 + $0x1c] sm:$0xf]
    %v281 = vld [vmem:[#allocation8 + $0x20] sm:$0xf]
    %v282 = vld [vmem:[#allocation8 + $0x24] sm:$0xf]
    %v283 = vld [vmem:[#allocation8 + $0x28] sm:$0xf]
    %v284 = vld [vmem:[#allocation8 + $0x2c] sm:$0xf]
    %v285 = vld [vmem:[#allocation8 + $0x30] sm:$0xf]
    %v286 = vld [vmem:[#allocation8 + $0x34] sm:$0xf]
    %v287 = vld [vmem:[#allocation8 + $0x38] sm:$0xf]
    %v288 = vld [vmem:[#allocation8 + $0x3c] sm:$0xf]
    %v289 = vlaneseq
    %v290 = vshrl.u32 %v289, 7
    %v291 = vsub.s32 0, %v290
    %v292 = vrot.slane %v104, %v291
    %v309 = vunpack.c.l.b16 %v273
    %v310 = vunpack.c.l.b16 %v274
    %v311 = vunpack.c.l.b16 %v275
    %v312 = vunpack.c.l.b16 %v276
    %v313 = vunpack.c.l.b16 %v277
    %v314 = vunpack.c.l.b16 %v278
    %v315 = vunpack.c.l.b16 %v279
    %v316 = vunpack.c.l.b16 %v280
    %v317 = vunpack.c.l.b16 %v281
    %v318 = vunpack.c.l.b16 %v282
    %v319 = vunpack.c.l.b16 %v283
    %v320 = vunpack.c.l.b16 %v284
    %v321 = vunpack.c.l.b16 %v285
    %v322 = vunpack.c.l.b16 %v286
    %v323 = vunpack.c.l.b16 %v287
    %v324 = vunpack.c.l.b16 %v288
    %v325 = vpack.c.b16 %v310, %v309
    %v326 = vpack.c.b16 %v312, %v311
    %v327 = vpack.c.b16 %v314, %v313
    %v328 = vpack.c.b16 %v316, %v315
    %v329 = vpack.c.b16 %v318, %v317
    %v330 = vpack.c.b16 %v320, %v319
    %v331 = vpack.c.b16 %v322, %v321
    %v332 = vpack.c.b16 %v324, %v323
    %341 = vmatprep.subr.bf16.mxu0 0
    %342 = vmatpush1.bf16.msra.mxu0 %v332
    %343 = vmatprep.subr.bf16.mxu0 0
    %344 = vmatpush1.bf16.msra.mxu0 %v331
    %345 = vmatprep.subr.bf16.mxu0 0
    %346 = vmatpush1.bf16.msra.mxu0 %v330
    %347 = vmatprep.subr.bf16.mxu0 0
    %348 = vmatpush1.bf16.msra.mxu0 %v329
    %349 = vmatprep.subr.bf16.mxu0 0
    %350 = vmatpush1.bf16.msra.mxu0 %v328
    %351 = vmatprep.subr.bf16.mxu0 0
    %352 = vmatpush1.bf16.msra.mxu0 %v327
    %353 = vmatprep.subr.bf16.mxu0 0
    %354 = vmatpush1.bf16.msra.mxu0 %v326
    %355 = vmatprep.subr.bf16.mxu0 0
    %356 = vmatpush1.bf16.msra.mxu0 %v325
    %357 = vmatprep.subr.bf16.mxu0 0
    %358 = vmatpush2.bf16.msra.mxu0 0
    %359 = vmatprep.subr.bf16.mxu0 0
    %360 = vmatpush2.bf16.msra.mxu0 0
    %361 = vmatprep.subr.bf16.mxu0 0
    %362 = vmatpush2.bf16.msra.mxu0 0
    %363 = vmatprep.subr.bf16.mxu0 0
    %364 = vmatpush2.bf16.msra.mxu0 0
    %365 = vmatprep.subr.bf16.mxu0 0
    %366 = vmatpush2.bf16.msra.mxu0 0
    %367 = vmatprep.subr.bf16.mxu0 0
    %368 = vmatpush2.bf16.msra.mxu0 0
    %369 = vmatprep.subr.bf16.mxu0 0
    %370 = vmatpush2.bf16.msra.mxu0 0
    %371 = vmatprep.subr.bf16.mxu0 0
    %372 = vmatpush2.bf16.msra.mxu0 0
    %373 = vmatprep.mubr.bf16.mxu0 0
    %374 = vmatmul.mubr.bf16.gmra.mxu0 %v272
    %v375 = vpop.f32.mrf.mxu0
    %v376 = vadd.f32 %v292, %v375
    %v377 = vpop.f32.mrf.mxu0
    %v378 = vpop.f32.mrf.mxu0
    %v379 = vadd.f32 %v292, %v378
    %v380 = vpop.f32.mrf.mxu0
    %381 = vdwg.mxu0
    %382 = vadd.xlane.f32.xlu0 %v376
    %v383 = vpop.xlane.xlu0 %382
    %384 = vadd.xlane.f32.xlu0 %v379
    %v385 = vpop.xlane.xlu0 %384
    %v386 = vmul.f32 %v383, 0.03125
    %v387 = vmul.f32 %v385, 0.03125
    %v388 = vmul.f32 %v376, %v376
    %v389 = vmul.f32 %v379, %v379
    %390 = vadd.xlane.f32.xlu0 %v388
    %v391 = vpop.xlane.xlu0 %390
    %392 = vadd.xlane.f32.xlu0 %v389
    %v393 = vpop.xlane.xlu0 %392
    %v394 = vmul.f32 %v391, 0.03125
    %v395 = vmul.f32 %v393, 0.03125
    %v396 = vmul.f32 %v386, %v386
    %v397 = vmul.f32 %v387, %v387
    %v398 = vsub.f32 %v394, %v396
    %v399 = vsub.f32 %v395, %v397
    %v400 = vmax.f32 %v398, 0.0
    %v401 = vmax.f32 %v399, 0.0
    %v402 = vsub.f32 %v376, %v386
    %v403 = vsub.f32 %v379, %v387
    %v404 = vadd.f32 %v400, 1e-05
    %v405 = vadd.f32 %v401, 1e-05
    %v406 = vrsqrt.pop %v404
    %v407 = vrsqrt.pop %v405
    %v408 = vmul.f32 %v402, %v406
    %v409 = vmul.f32 %v403, %v407
    %v410 = vlaneseq
    %v411 = vshrl.u32 %v410, 7
    %v412 = vsub.s32 0, %v411
    %v413 = vrot.slane %v105, %v412
    %v414 = vmul.f32 %v408, %v413
    %v415 = vmul.f32 %v409, %v413
    %v416 = vlaneseq
    %v417 = vshrl.u32 %v416, 7
    %v418 = vsub.s32 0, %v417
    %v419 = vrot.slane %v106, %v418
    %v420 = vadd.f32 %v414, %v419
    %v421 = vadd.f32 %v415, %v419
    %vm422 = vcmp.ge.f32.partialorder %v420, 0.0
    %vm423 = vcmp.ge.f32.partialorder %v421, 0.0
    %v424 = vmul.f32 %v267, %v420
    %v425 = vmul.f32 %v267, %v421
    %v426 = vsel %vm422, %v420, %v424
    %v427 = vsel %vm423, %v421, %v425
    %v428 = vpack.c.bf16 %v427, %v426
    %v429 = vld [vmem:[#allocation9] sm:$0xf]
    %v430 = vld [vmem:[#allocation9 + $0x4] sm:$0xf]
    %v431 = vld [vmem:[#allocation9 + $0x8] sm:$0xf]
    %v432 = vld [vmem:[#allocation9 + $0xc] sm:$0xf]
    %v433 = vld [vmem:[#allocation9 + $0x10] sm:$0xf]
    %v434 = vld [vmem:[#allocation9 + $0x14] sm:$0xf]
    %v435 = vld [vmem:[#allocation9 + $0x18] sm:$0xf]
    %v436 = vld [vmem:[#allocation9 + $0x1c] sm:$0xf]
    %v437 = vld [vmem:[#allocation9 + $0x20] sm:$0xf]
    %v438 = vld [vmem:[#allocation9 + $0x24] sm:$0xf]
    %v439 = vld [vmem:[#allocation9 + $0x28] sm:$0xf]
    %v440 = vld [vmem:[#allocation9 + $0x2c] sm:$0xf]
    %v441 = vld [vmem:[#allocation9 + $0x30] sm:$0xf]
    %v442 = vld [vmem:[#allocation9 + $0x34] sm:$0xf]
    %v443 = vld [vmem:[#allocation9 + $0x38] sm:$0xf]
    %v444 = vld [vmem:[#allocation9 + $0x3c] sm:$0xf]
    %v445 = vlaneseq
    %v446 = vshrl.u32 %v445, 7
    %v447 = vsub.s32 0, %v446
    %v448 = vrot.slane %v107, %v447
    %v465 = vunpack.c.l.b16 %v429
    %v466 = vunpack.c.l.b16 %v430
    %v467 = vunpack.c.l.b16 %v431
    %v468 = vunpack.c.l.b16 %v432
    %v469 = vunpack.c.l.b16 %v433
    %v470 = vunpack.c.l.b16 %v434
    %v471 = vunpack.c.l.b16 %v435
    %v472 = vunpack.c.l.b16 %v436
    %v473 = vunpack.c.l.b16 %v437
    %v474 = vunpack.c.l.b16 %v438
    %v475 = vunpack.c.l.b16 %v439
    %v476 = vunpack.c.l.b16 %v440
    %v477 = vunpack.c.l.b16 %v441
    %v478 = vunpack.c.l.b16 %v442
    %v479 = vunpack.c.l.b16 %v443
    %v480 = vunpack.c.l.b16 %v444
    %v481 = vpack.c.b16 %v466, %v465
    %v482 = vpack.c.b16 %v468, %v467
    %v483 = vpack.c.b16 %v470, %v469
    %v484 = vpack.c.b16 %v472, %v471
    %v485 = vpack.c.b16 %v474, %v473
    %v486 = vpack.c.b16 %v476, %v475
    %v487 = vpack.c.b16 %v478, %v477
    %v488 = vpack.c.b16 %v480, %v479
    %497 = vmatprep.subr.bf16.mxu0 0
    %498 = vmatpush1.bf16.msra.mxu0 %v488
    %499 = vmatprep.subr.bf16.mxu0 0
    %500 = vmatpush1.bf16.msra.mxu0 %v487
    %501 = vmatprep.subr.bf16.mxu0 0
    %502 = vmatpush1.bf16.msra.mxu0 %v486
    %503 = vmatprep.subr.bf16.mxu0 0
    %504 = vmatpush1.bf16.msra.mxu0 %v485
    %505 = vmatprep.subr.bf16.mxu0 0
    %506 = vmatpush1.bf16.msra.mxu0 %v484
    %507 = vmatprep.subr.bf16.mxu0 0
    %508 = vmatpush1.bf16.msra.mxu0 %v483
    %509 = vmatprep.subr.bf16.mxu0 0
    %510 = vmatpush1.bf16.msra.mxu0 %v482
    %511 = vmatprep.subr.bf16.mxu0 0
    %512 = vmatpush1.bf16.msra.mxu0 %v481
    %513 = vmatprep.subr.bf16.mxu0 0
    %514 = vmatpush2.bf16.msra.mxu0 0
    %515 = vmatprep.subr.bf16.mxu0 0
    %516 = vmatpush2.bf16.msra.mxu0 0
    %517 = vmatprep.subr.bf16.mxu0 0
    %518 = vmatpush2.bf16.msra.mxu0 0
    %519 = vmatprep.subr.bf16.mxu0 0
    %520 = vmatpush2.bf16.msra.mxu0 0
    %521 = vmatprep.subr.bf16.mxu0 0
    %522 = vmatpush2.bf16.msra.mxu0 0
    %523 = vmatprep.subr.bf16.mxu0 0
    %524 = vmatpush2.bf16.msra.mxu0 0
    %525 = vmatprep.subr.bf16.mxu0 0
    %526 = vmatpush2.bf16.msra.mxu0 0
    %527 = vmatprep.subr.bf16.mxu0 0
    %528 = vmatpush2.bf16.msra.mxu0 0
    %529 = vmatprep.mubr.bf16.mxu0 0
    %530 = vmatmul.mubr.bf16.gmra.mxu0 %v428
    %v531 = vpop.f32.mrf.mxu0
    %v532 = vadd.f32 %v448, %v531
    %v533 = vpop.f32.mrf.mxu0
    %v534 = vpop.f32.mrf.mxu0
    %v535 = vadd.f32 %v448, %v534
    %v536 = vpop.f32.mrf.mxu0
    %537 = vdwg.mxu0
    %v538 = vadd.f32 %v532, %v219
    %v539 = vadd.f32 %v535, %v222
    %v540 = vpack.c.bf16 %v539, %v538
    %v541 = vld [vmem:[#allocation11] sm:$0xf]
    %v542 = vld [vmem:[#allocation11 + $0x4] sm:$0xf]
    %v543 = vld [vmem:[#allocation11 + $0x8] sm:$0xf]
    %v544 = vld [vmem:[#allocation11 + $0xc] sm:$0xf]
    %v545 = vld [vmem:[#allocation11 + $0x10] sm:$0xf]
    %v546 = vld [vmem:[#allocation11 + $0x14] sm:$0xf]
    %v547 = vld [vmem:[#allocation11 + $0x18] sm:$0xf]
    %v548 = vld [vmem:[#allocation11 + $0x1c] sm:$0xf]
    %v549 = vld [vmem:[#allocation11 + $0x20] sm:$0xf]
    %v550 = vld [vmem:[#allocation11 + $0x24] sm:$0xf]
    %v551 = vld [vmem:[#allocation11 + $0x28] sm:$0xf]
    %v552 = vld [vmem:[#allocation11 + $0x2c] sm:$0xf]
    %v553 = vld [vmem:[#allocation11 + $0x30] sm:$0xf]
    %v554 = vld [vmem:[#allocation11 + $0x34] sm:$0xf]
    %v555 = vld [vmem:[#allocation11 + $0x38] sm:$0xf]
    %v556 = vld [vmem:[#allocation11 + $0x3c] sm:$0xf]
    %v557 = vld [vmem:[%s6] sm:$0x1]
    %v559 = vlaneseq
    %v560 = vshrl.u32 %v559, 7
    %v561 = vsub.s32 0, %v560
    %v562 = vrot.slane %v557, %v561
    %v580 = vunpack.c.l.b16 %v541
    %v581 = vunpack.c.l.b16 %v542
    %v582 = vunpack.c.l.b16 %v543
    %v583 = vunpack.c.l.b16 %v544
    %v584 = vunpack.c.l.b16 %v545
    %v585 = vunpack.c.l.b16 %v546
    %v586 = vunpack.c.l.b16 %v547
    %v587 = vunpack.c.l.b16 %v548
    %v588 = vunpack.c.l.b16 %v549
    %v589 = vunpack.c.l.b16 %v550
    %v590 = vunpack.c.l.b16 %v551
    %v591 = vunpack.c.l.b16 %v552
    %v592 = vunpack.c.l.b16 %v553
    %v593 = vunpack.c.l.b16 %v554
    %v594 = vunpack.c.l.b16 %v555
    %v595 = vunpack.c.l.b16 %v556
    %v596 = vpack.c.b16 %v581, %v580
    %v597 = vpack.c.b16 %v583, %v582
    %v598 = vpack.c.b16 %v585, %v584
    %v599 = vpack.c.b16 %v587, %v586
    %v600 = vpack.c.b16 %v589, %v588
    %v601 = vpack.c.b16 %v591, %v590
    %v602 = vpack.c.b16 %v593, %v592
    %v603 = vpack.c.b16 %v595, %v594
    %612 = vmatprep.subr.bf16.mxu0 0
    %613 = vmatpush1.bf16.msra.mxu0 %v603
    %614 = vmatprep.subr.bf16.mxu0 0
    %615 = vmatpush1.bf16.msra.mxu0 %v602
    %616 = vmatprep.subr.bf16.mxu0 0
    %617 = vmatpush1.bf16.msra.mxu0 %v601
    %618 = vmatprep.subr.bf16.mxu0 0
    %619 = vmatpush1.bf16.msra.mxu0 %v600
    %620 = vmatprep.subr.bf16.mxu0 0
    %621 = vmatpush1.bf16.msra.mxu0 %v599
    %622 = vmatprep.subr.bf16.mxu0 0
    %623 = vmatpush1.bf16.msra.mxu0 %v598
    %624 = vmatprep.subr.bf16.mxu0 0
    %625 = vmatpush1.bf16.msra.mxu0 %v597
    %626 = vmatprep.subr.bf16.mxu0 0
    %627 = vmatpush1.bf16.msra.mxu0 %v596
    %628 = vmatprep.subr.bf16.mxu0 0
    %629 = vmatpush2.bf16.msra.mxu0 0
    %630 = vmatprep.subr.bf16.mxu0 0
    %631 = vmatpush2.bf16.msra.mxu0 0
    %632 = vmatprep.subr.bf16.mxu0 0
    %633 = vmatpush2.bf16.msra.mxu0 0
    %634 = vmatprep.subr.bf16.mxu0 0
    %635 = vmatpush2.bf16.msra.mxu0 0
    %636 = vmatprep.subr.bf16.mxu0 0
    %637 = vmatpush2.bf16.msra.mxu0 0
    %638 = vmatprep.subr.bf16.mxu0 0
    %639 = vmatpush2.bf16.msra.mxu0 0
    %640 = vmatprep.subr.bf16.mxu0 0
    %641 = vmatpush2.bf16.msra.mxu0 0
    %642 = vmatprep.subr.bf16.mxu0 0
    %643 = vmatpush2.bf16.msra.mxu0 0
    %644 = vmatprep.mubr.bf16.mxu0 0
    %645 = vmatmul.mubr.bf16.gmra.mxu0 %v540
    %v646 = vpop.f32.mrf.mxu0
    %v647 = vadd.f32 %v562, %v646
    %v648 = vpop.f32.mrf.mxu0
    %v649 = vpop.f32.mrf.mxu0
    %v650 = vadd.f32 %v562, %v649
    %v651 = vpop.f32.mrf.mxu0
    %652 = vdwg.mxu0
    %vm653 = vcmp.ge.f32.partialorder %v647, 0.0
    %vm654 = vcmp.ge.f32.partialorder %v650, 0.0
    %v655 = vmul.f32 %v267, %v647
    %v656 = vmul.f32 %v267, %v650
    %v657 = vsel %vm653, %v647, %v655
    %v658 = vsel %vm654, %v650, %v656
    %659 = vst [vmem:[#allocation12] sm:$0xff] %v657
    %660 = vst [vmem:[#allocation12 + $0x8] sm:$0xff] %v658
    // Predicated region
    $region54: #{tpu_custom_call.1} parent=1 // pred_check
      _
    $region55: #{tpu_custom_call.1} parent=1 // pred_check_branch
      %662 = sbr.rel (0) target = $region57
    $region56: #{tpu_custom_call.1} parent=1 // pred_region
      %s664 = ssub.s32 256, 256
      %665 = vsyncadd [#allocation5], %s664
      %s666 = sshll.u32 [#allocation12], 4
      %s667 = int_to_ptr.vmem [resolvable:$true] %s666
      %672 = dma.vmem_to_hbm [thread:$0]  %s667, 256, %s8, [#allocation5], 128, 128, 8
    $region57: #{tpu_custom_call.1} parent=1 // pred_fallthru
      _
    // Predicated region
    $region58: #{tpu_custom_call.1} parent=1 // pred_check
      _
    $region59: #{tpu_custom_call.1} parent=1 // pred_check_branch
      %674 = sbr.rel (0) target = $region61
    $region60: #{tpu_custom_call.1} parent=1 // pred_region
      %675 = dma.done [#allocation5], 256
    $region61: #{tpu_custom_call.1} parent=1 // pred_fallthru
      _
    %676 = vsyncpa [#allocation4], 1
    %677 = vsyncpa [#allocation7], 1
    %678 = vsyncpa [#allocation10], 1
    %679 = vsyncpa [#allocation5], 1

</llo_original>
